<compile_context>
chip_gen: v7x
topology: tpu7x:2x2x1
jax: 0.10.0
libtpu: 0.0.40
codegen_flags: <defaults>
</compile_context>

<pallas_src>
import math

import jax
import jax.numpy as jnp
from jax.experimental import pallas as pl
from jax.experimental.pallas import tpu as pltpu

HEAD_W = 128   # lane-dense packed head width (7 real columns + zero padding)
N_HEADS = 7    # [scale, trans_x, trans_y, azm, ele, cyc, logit]


def _camera_kernel(feat_ref, w1_ref, b1_ref, w2_ref, b2_ref, wh_ref, bh_ref,
                   colp_ref, out_ref):
    # In-kernel f32 -> bf16 cast: hidden under the pipelined DMA instead of a
    # separate un-hidden XLA cast over the whole feat array in HBM.
    x = feat_ref[...].astype(jnp.bfloat16)                        # (TB, D)

    # ---- encoder: Linear -> LeakyReLU(0.1) -> Linear -> LeakyReLU(0.1) ----
    h = jnp.dot(x, w1_ref[...], preferred_element_type=jnp.float32) + b1_ref[...]
    h = jnp.maximum(h, 0.1 * h)                                   # leaky relu, f32 VPU
    h = jnp.dot(h.astype(jnp.bfloat16), w2_ref[...],
                preferred_element_type=jnp.float32) + b2_ref[...]
    h = jnp.maximum(h, 0.1 * h)                                   # (TB, D) f32

    # ---- fused heads, lane-dense: (TB,128) = [scale | trans | pose | logit | 0-pad] ----
    y = jnp.dot(h.astype(jnp.bfloat16), wh_ref[...],
                preferred_element_type=jnp.float32) + bh_ref[...]

    colp = colp_ref[...]                                          # (8, 128) f32
    pre_scale, pre_bias = colp[0:1, :], colp[1:2, :]
    post_scale, post_bias = colp[2:3, :], colp[3:4, :]
    tanh_mask, relu_floor = colp[4:5, :], colp[5:6, :]

    # col 0: relu(y*sc_scaling + sc_bias) + 1e-12 ; cols 3-5: tanh(y*ang)*[azm,ele,cyc]
    # cols 1,2,6: identity (floor=-1e30 makes the max a no-op).
    z = y * pre_scale + pre_bias
    nl = jnp.where(tanh_mask > 0.5, jnp.tanh(z), jnp.maximum(z, relu_floor))
    out_ref[...] = (nl * post_scale + post_bias).astype(out_ref.dtype)


def prepare_camera_params(params, *, sc_bias, sc_scaling, ang, azm, ele, cyc):
    """Once-per-parameter-set packing — hoisted out of the per-call hot path."""
    w1, b1, w2, b2, wh, bh = params
    D = w1.shape[0]

    w1_bf = w1.astype(jnp.bfloat16)
    w2_bf = w2.astype(jnp.bfloat16)
    wh_bf = jnp.zeros((D, HEAD_W), jnp.bfloat16).at[:, :N_HEADS].set(
        wh.astype(jnp.bfloat16))
    bh_p = jnp.zeros((1, HEAD_W), jnp.float32).at[:, :N_HEADS].set(
        bh.astype(jnp.float32))

    # Per-column epilogue params packed into one (8,128) f32 tile.
    pre_scale = jnp.ones((HEAD_W,), jnp.float32).at[0].set(sc_scaling).at[3:6].set(ang)
    pre_bias = jnp.zeros((HEAD_W,), jnp.float32).at[0].set(sc_bias)
    post_scale = (jnp.ones((HEAD_W,), jnp.float32)
                  .at[3].set(azm).at[4].set(ele).at[5].set(cyc))
    post_bias = jnp.zeros((HEAD_W,), jnp.float32).at[0].set(1e-12)
    tanh_mask = jnp.zeros((HEAD_W,), jnp.float32).at[3:6].set(1.0)
    relu_floor = jnp.full((HEAD_W,), -1e30, jnp.float32).at[0].set(0.0)
    pad = jnp.zeros((HEAD_W,), jnp.float32)
    colp = jnp.stack([pre_scale, pre_bias, post_scale, post_bias,
                      tanh_mask, relu_floor, pad, pad])            # (8, 128)

    return (w1_bf, b1.astype(jnp.float32), w2_bf, b2.astype(jnp.float32),
            wh_bf, bh_p, colp)


def _choose_batch_tile(B, block_b):
    """Multiple-of-8 batch tile; >= 2 grid steps for large batches (v7x megacore)."""
    if B < 256 and B <= block_b:
        return B, 1                                  # single full-batch block
    n_steps = max(2, pl.cdiv(B, block_b))
    tb = pl.cdiv(pl.cdiv(B, n_steps), 8) * 8
    return tb, pl.cdiv(B, tb)


def camera_predictor_forward(feat, packed_params, *, block_b=512,
                             out_dtype=jnp.bfloat16):
    """feat: (B, D) f32 (or bf16).

    Returns the padded lane-dense (Bp, 128) slab in `out_dtype`:
    columns [:7] = [scale, trans(2), pose(3), logit], rows [:B] are valid.
    Slicing is left to the consumer (avoids an extra HBM round trip).
    """
    B, D = feat.shape
    w1_bf, b1, w2_bf, b2, wh_bf, bh_p, colp = packed_params

    TB, n_steps = _choose_batch_tile(B, block_b)
    Bp = TB * n_steps
    if Bp != B:
        feat = jnp.pad(feat, ((0, Bp - B), (0, 0)))   # only when B is ragged

    # VMEM budget: single-buffered resident weights + double-buffered feat/out tiles.
    weight_bytes = (2 * D * D + D * HEAD_W) * 2 + (2 * D + 9 * HEAD_W) * 4
    stream_bytes = 2 * (TB * D * feat.dtype.itemsize
                        + TB * HEAD_W * jnp.dtype(out_dtype).itemsize)
    budget = weight_bytes + stream_bytes + (4 << 20)
    try:
        vmem_cap = pltpu.get_tpu_info().vmem_capacity_bytes
    except Exception:                                 # pragma: no cover
        vmem_cap = 64 << 20                           # v7x per-TC (smallest target)
    vmem_limit = int(min(max(budget, 16 << 20), int(0.85 * vmem_cap)))

    cost = pl.CostEstimate(
        flops=2 * Bp * D * (2 * D + HEAD_W),
        transcendentals=Bp * HEAD_W,
        bytes_accessed=(Bp * D * feat.dtype.itemsize + weight_bytes
                        + Bp * HEAD_W * jnp.dtype(out_dtype).itemsize))

    resident = dict(pipeline_mode=pl.Buffered(1))     # constant index map => 1 buffer
    # TODO(synk): raise feat/out to pl.Buffered(3) if a bundle dump shows the input
    # DMA exposed in the mem-bound small-D / large-B regime.

    out = pl.pallas_call(
        _camera_kernel,
        out_shape=jax.ShapeDtypeStruct((Bp, HEAD_W), out_dtype),
        grid_spec=pltpu.PrefetchScalarGridSpec(
            num_scalar_prefetch=0,
            grid=(n_steps,),
            in_specs=[
                pl.BlockSpec((TB, D), lambda i: (i, 0)),                  # feat (streamed)
                pl.BlockSpec((D, D), lambda i: (0, 0), **resident),       # w1
                pl.BlockSpec((1, D), lambda i: (0, 0), **resident),       # b1
                pl.BlockSpec((D, D), lambda i: (0, 0), **resident),       # w2
                pl.BlockSpec((1, D), lambda i: (0, 0), **resident),       # b2
                pl.BlockSpec((D, HEAD_W), lambda i: (0, 0), **resident),  # head weights
                pl.BlockSpec((1, HEAD_W), lambda i: (0, 0), **resident),  # head biases
                pl.BlockSpec((8, HEAD_W), lambda i: (0, 0), **resident),  # epilogue consts
            ],
            out_specs=pl.BlockSpec((TB, HEAD_W), lambda i: (i, 0)),
        ),
        compiler_params=pltpu.CompilerParams(
            dimension_semantics=("parallel",),
            vmem_limit_bytes=vmem_limit),
        cost_estimate=cost,
    )(feat, w1_bf, b1, w2_bf, b2, wh_bf, bh_p, colp)

    return out


def init_params(key, input_dim):
    """Deterministic synthetic parameters (shapes match the torch module)."""
    D = input_dim
    ks = jax.random.split(key, 12)
    s = 0.02
    # encoder (stored (in, out) so the kernel computes x @ W + b)
    w1 = s * jax.random.normal(ks[0], (D, D), jnp.float32)
    b1 = s * jax.random.normal(ks[1], (1, D), jnp.float32)
    w2 = s * jax.random.normal(ks[2], (D, D), jnp.float32)
    b2 = s * jax.random.normal(ks[3], (1, D), jnp.float32)
    # heads packed: scale (D,1) | trans (D,2) | pose (D,3) | logit (D,1) -> (D, 7)
    w_scale = s * jax.random.normal(ks[4], (D, 1), jnp.float32)
    b_scale = s * jax.random.normal(ks[5], (1,), jnp.float32)
    w_trans = s * jax.random.normal(ks[6], (D, 2), jnp.float32)
    b_trans = s * jax.random.normal(ks[7], (2,), jnp.float32)
    w_pose = s * jax.random.normal(ks[8], (D, 3), jnp.float32)
    b_pose = s * jax.random.normal(ks[9], (3,), jnp.float32)
    w_logit = s * jax.random.normal(ks[10], (D, 1), jnp.float32)
    b_logit = s * jax.random.normal(ks[11], (1,), jnp.float32)
    wh = jnp.concatenate([w_scale, w_trans, w_pose, w_logit], axis=1)   # (D, 7)
    bh = jnp.concatenate([b_scale, b_trans, b_pose, b_logit])[None, :]  # (1, 7)
    return (w1, b1, w2, b2, wh, bh)


def reference_forward(feat, params, *, sc_bias, sc_scaling, ang, azm, ele, cyc):
    """Pure-JAX f32 reference mirroring the PyTorch CameraPredictor forward."""
    w1, b1, w2, b2, wh, bh = params
    h = feat @ w1 + b1
    h = jnp.where(h >= 0, h, 0.1 * h)
    h = h @ w2 + b2
    h = jnp.where(h >= 0, h, 0.1 * h)
    y = h @ wh + bh                                                    # (B, 7)
    scale = jnp.maximum(y[:, 0:1] * sc_scaling + sc_bias, 0.0) + 1e-12
    trans = y[:, 1:3]
    pose = jnp.tanh(y[:, 3:6] * ang) * jnp.array([azm, ele, cyc], jnp.float32)
    logit = y[:, 6:7]
    return jnp.concatenate([scale, trans, pose, logit], axis=-1)


if __name__ == "__main__":
    B, D = 8, 32
    sc_bias, sc_scaling = 0.75, 0.05
    ang = 0.1
    azm, ele, cyc = math.pi / 6.0, math.pi / 9.0, math.pi / 9.0

    key = jax.random.PRNGKey(0)
    kf, kp = jax.random.split(key)
    feat = jax.random.normal(kf, (B, D), jnp.float32)
    params = init_params(kp, D)

    # Once-per-parameter-set packing (out of the hot path).
    packed = prepare_camera_params(params, sc_bias=sc_bias, sc_scaling=sc_scaling,
                                   ang=ang, azm=azm, ele=ele, cyc=cyc)

    fwd = jax.jit(lambda f, p: camera_predictor_forward(f, p, block_b=512))
    out_slab = jax.block_until_ready(fwd(feat, packed))

    out = out_slab[:B, :N_HEADS].astype(jnp.float32)
    ref = reference_forward(feat, params, sc_bias=sc_bias, sc_scaling=sc_scaling,
                            ang=ang, azm=azm, ele=ele, cyc=cyc)

    assert out.shape == (B, 7)
    # bf16 MXU operands + bf16 output store vs f32 reference -> loosened tolerance.
    assert jnp.allclose(out, ref, atol=1e-2, rtol=5e-2), (
        f"max abs diff {float(jnp.max(jnp.abs(out - ref)))}")
    print("KERNEL_OK")
</pallas_src>

<mosaic_0001>
module attributes {stable_mosaic.version = 11 : i64} {
  func.func @_camera_kernel(%arg0: i32, %arg1: memref<8x32xf32, #tpu.memory_space<vmem>>, %arg2: memref<32x32xbf16, #tpu.memory_space<vmem>>, %arg3: memref<1x32xf32, #tpu.memory_space<vmem>>, %arg4: memref<32x32xbf16, #tpu.memory_space<vmem>>, %arg5: memref<1x32xf32, #tpu.memory_space<vmem>>, %arg6: memref<32x128xbf16, #tpu.memory_space<vmem>>, %arg7: memref<1x128xf32, #tpu.memory_space<vmem>>, %arg8: memref<8x128xf32, #tpu.memory_space<vmem>>, %arg9: memref<8x128xbf16, #tpu.memory_space<vmem>>) attributes {dimension_semantics = [#tpu.dimension_semantics<parallel>], iteration_bounds = array<i64: 1>, scalar_prefetch = 0 : i64, scratch_operands = 0 : i64, tpu.core_type = #tpu.core_type<tc>, window_params = [{transform_indices = @transform_0, window_bounds = array<i64: 8, 32>}, {pipeline_mode = #tpu.pipeline_mode<synchronous>, transform_indices = @transform_1, window_bounds = array<i64: 32, 32>}, {pipeline_mode = #tpu.pipeline_mode<synchronous>, transform_indices = @transform_2, window_bounds = array<i64: 1, 32>}, {pipeline_mode = #tpu.pipeline_mode<synchronous>, transform_indices = @transform_3, window_bounds = array<i64: 32, 32>}, {pipeline_mode = #tpu.pipeline_mode<synchronous>, transform_indices = @transform_4, window_bounds = array<i64: 1, 32>}, {pipeline_mode = #tpu.pipeline_mode<synchronous>, transform_indices = @transform_5, window_bounds = array<i64: 32, 128>}, {pipeline_mode = #tpu.pipeline_mode<synchronous>, transform_indices = @transform_6, window_bounds = array<i64: 1, 128>}, {pipeline_mode = #tpu.pipeline_mode<synchronous>, transform_indices = @transform_7, window_bounds = array<i64: 8, 128>}, {transform_indices = @transform_8, window_bounds = array<i64: 8, 128>}]} {
    %c0 = arith.constant 0 : index
    %c0_0 = arith.constant 0 : index
    %0 = vector.load %arg1[%c0, %c0_0] : memref<8x32xf32, #tpu.memory_space<vmem>>, vector<8x32xf32>
    %1 = arith.truncf %0 : vector<8x32xf32> to vector<8x32xbf16>
    %c0_1 = arith.constant 0 : index
    %c0_2 = arith.constant 0 : index
    %2 = vector.load %arg2[%c0_1, %c0_2] : memref<32x32xbf16, #tpu.memory_space<vmem>>, vector<32x32xbf16>
    %cst = arith.constant dense<0.000000e+00> : vector<8x32xf32>
    %3 = tpu.matmul %1, %2, %cst {dimension_numbers = #tpu.dot_dimension_numbers<[1], [0], [0], [1], [0, 0, 1, 1], [], []>} : vector<8x32xbf16>, vector<32x32xbf16>, vector<8x32xf32> -> vector<8x32xf32>
    %c0_3 = arith.constant 0 : index
    %c0_4 = arith.constant 0 : index
    %4 = vector.load %arg3[%c0_3, %c0_4] : memref<1x32xf32, #tpu.memory_space<vmem>>, vector<1x32xf32>
    %5 = vector.broadcast %4 : vector<1x32xf32> to vector<8x32xf32>
    %6 = arith.addf %3, %5 : vector<8x32xf32>
    %cst_5 = arith.constant 1.000000e-01 : f32
    %7 = vector.broadcast %cst_5 : f32 to vector<8x32xf32>
    %8 = arith.mulf %7, %6 : vector<8x32xf32>
    %9 = arith.maximumf %6, %8 : vector<8x32xf32>
    %10 = arith.truncf %9 : vector<8x32xf32> to vector<8x32xbf16>
    %c0_6 = arith.constant 0 : index
    %c0_7 = arith.constant 0 : index
    %11 = vector.load %arg4[%c0_6, %c0_7] : memref<32x32xbf16, #tpu.memory_space<vmem>>, vector<32x32xbf16>
    %cst_8 = arith.constant dense<0.000000e+00> : vector<8x32xf32>
    %12 = tpu.matmul %10, %11, %cst_8 {dimension_numbers = #tpu.dot_dimension_numbers<[1], [0], [0], [1], [0, 0, 1, 1], [], []>} : vector<8x32xbf16>, vector<32x32xbf16>, vector<8x32xf32> -> vector<8x32xf32>
    %c0_9 = arith.constant 0 : index
    %c0_10 = arith.constant 0 : index
    %13 = vector.load %arg5[%c0_9, %c0_10] : memref<1x32xf32, #tpu.memory_space<vmem>>, vector<1x32xf32>
    %14 = vector.broadcast %13 : vector<1x32xf32> to vector<8x32xf32>
    %15 = arith.addf %12, %14 : vector<8x32xf32>
    %cst_11 = arith.constant 1.000000e-01 : f32
    %16 = vector.broadcast %cst_11 : f32 to vector<8x32xf32>
    %17 = arith.mulf %16, %15 : vector<8x32xf32>
    %18 = arith.maximumf %15, %17 : vector<8x32xf32>
    %19 = arith.truncf %18 : vector<8x32xf32> to vector<8x32xbf16>
    %c0_12 = arith.constant 0 : index
    %c0_13 = arith.constant 0 : index
    %20 = vector.load %arg6[%c0_12, %c0_13] : memref<32x128xbf16, #tpu.memory_space<vmem>>, vector<32x128xbf16>
    %cst_14 = arith.constant dense<0.000000e+00> : vector<8x128xf32>
    %21 = tpu.matmul %19, %20, %cst_14 {dimension_numbers = #tpu.dot_dimension_numbers<[1], [0], [0], [1], [0, 0, 1, 1], [], []>} : vector<8x32xbf16>, vector<32x128xbf16>, vector<8x128xf32> -> vector<8x128xf32>
    %c0_15 = arith.constant 0 : index
    %c0_16 = arith.constant 0 : index
    %22 = vector.load %arg7[%c0_15, %c0_16] : memref<1x128xf32, #tpu.memory_space<vmem>>, vector<1x128xf32>
    %23 = vector.broadcast %22 : vector<1x128xf32> to vector<8x128xf32>
    %24 = arith.addf %21, %23 : vector<8x128xf32>
    %c0_17 = arith.constant 0 : index
    %c0_18 = arith.constant 0 : index
    %25 = vector.load %arg8[%c0_17, %c0_18] : memref<8x128xf32, #tpu.memory_space<vmem>>, vector<8x128xf32>
    %26 = vector.extract_strided_slice %25 {offsets = [0, 0], sizes = [1, 128], strides = [1, 1]} : vector<8x128xf32> to vector<1x128xf32>
    %27 = vector.extract_strided_slice %25 {offsets = [1, 0], sizes = [1, 128], strides = [1, 1]} : vector<8x128xf32> to vector<1x128xf32>
    %28 = vector.extract_strided_slice %25 {offsets = [2, 0], sizes = [1, 128], strides = [1, 1]} : vector<8x128xf32> to vector<1x128xf32>
    %29 = vector.extract_strided_slice %25 {offsets = [3, 0], sizes = [1, 128], strides = [1, 1]} : vector<8x128xf32> to vector<1x128xf32>
    %30 = vector.extract_strided_slice %25 {offsets = [4, 0], sizes = [1, 128], strides = [1, 1]} : vector<8x128xf32> to vector<1x128xf32>
    %31 = vector.extract_strided_slice %25 {offsets = [5, 0], sizes = [1, 128], strides = [1, 1]} : vector<8x128xf32> to vector<1x128xf32>
    %32 = vector.broadcast %26 : vector<1x128xf32> to vector<8x128xf32>
    %33 = arith.mulf %24, %32 : vector<8x128xf32>
    %34 = vector.broadcast %27 : vector<1x128xf32> to vector<8x128xf32>
    %35 = arith.addf %33, %34 : vector<8x128xf32>
    %cst_19 = arith.constant 5.000000e-01 : f32
    %36 = vector.broadcast %cst_19 : f32 to vector<1x128xf32>
    %37 = arith.cmpf ogt, %30, %36 : vector<1x128xf32>
    %38 = math.tanh %35 : vector<8x128xf32>
    %39 = vector.broadcast %31 : vector<1x128xf32> to vector<8x128xf32>
    %40 = arith.maximumf %35, %39 : vector<8x128xf32>
    %41 = vector.shape_cast %37 : vector<1x128xi1> to vector<1x128xi1>
    %42 = vector.broadcast %41 : vector<1x128xi1> to vector<8x128xi1>
    %43 = arith.select %42, %38, %40 : vector<8x128xi1>, vector<8x128xf32>
    %44 = vector.broadcast %28 : vector<1x128xf32> to vector<8x128xf32>
    %45 = arith.mulf %43, %44 : vector<8x128xf32>
    %46 = vector.broadcast %29 : vector<1x128xf32> to vector<8x128xf32>
    %47 = arith.addf %45, %46 : vector<8x128xf32>
    %48 = arith.truncf %47 : vector<8x128xf32> to vector<8x128xbf16>
    %c0_20 = arith.constant 0 : index
    %c0_21 = arith.constant 0 : index
    %49 = vector.load %arg9[%c0_20, %c0_21] : memref<8x128xbf16, #tpu.memory_space<vmem>>, vector<8x128xbf16>
    tpu.vector_store %arg9[%c0_20, %c0_21], %48 {strides = array<i32>} : memref<8x128xbf16, #tpu.memory_space<vmem>>, vector<8x128xbf16>,
    return
  }
  func.func @transform_0(%arg0: i32) -> (i32, i32) {
    %c0_i32 = arith.constant 0 : i32
    %c0_i32_0 = arith.constant 0 : i32
    return %arg0, %c0_i32 : i32, i32
  }
  func.func @transform_1(%arg0: i32) -> (i32, i32) {
    %c0_i32 = arith.constant 0 : i32
    %c0_i32_0 = arith.constant 0 : i32
    %c0_i32_1 = arith.constant 0 : i32
    return %c0_i32, %c0_i32_0 : i32, i32
  }
  func.func @transform_2(%arg0: i32) -> (i32, i32) {
    %c0_i32 = arith.constant 0 : i32
    %c0_i32_0 = arith.constant 0 : i32
    %c0_i32_1 = arith.constant 0 : i32
    return %c0_i32, %c0_i32_0 : i32, i32
  }
  func.func @transform_3(%arg0: i32) -> (i32, i32) {
    %c0_i32 = arith.constant 0 : i32
    %c0_i32_0 = arith.constant 0 : i32
    %c0_i32_1 = arith.constant 0 : i32
    return %c0_i32, %c0_i32_0 : i32, i32
  }
  func.func @transform_4(%arg0: i32) -> (i32, i32) {
    %c0_i32 = arith.constant 0 : i32
    %c0_i32_0 = arith.constant 0 : i32
    %c0_i32_1 = arith.constant 0 : i32
    return %c0_i32, %c0_i32_0 : i32, i32
  }
  func.func @transform_5(%arg0: i32) -> (i32, i32) {
    %c0_i32 = arith.constant 0 : i32
    %c0_i32_0 = arith.constant 0 : i32
    %c0_i32_1 = arith.constant 0 : i32
    return %c0_i32, %c0_i32_0 : i32, i32
  }
  func.func @transform_6(%arg0: i32) -> (i32, i32) {
    %c0_i32 = arith.constant 0 : i32
    %c0_i32_0 = arith.constant 0 : i32
    %c0_i32_1 = arith.constant 0 : i32
    return %c0_i32, %c0_i32_0 : i32, i32
  }
  func.func @transform_7(%arg0: i32) -> (i32, i32) {
    %c0_i32 = arith.constant 0 : i32
    %c0_i32_0 = arith.constant 0 : i32
    %c0_i32_1 = arith.constant 0 : i32
    return %c0_i32, %c0_i32_0 : i32, i32
  }
  func.func @transform_8(%arg0: i32) -> (i32, i32) {
    %c0_i32 = arith.constant 0 : i32
    %c0_i32_0 = arith.constant 0 : i32
    return %arg0, %c0_i32 : i32, i32
  }
}

</mosaic_0001>

<llo_original>
// kernel: _lambda_.1
$region0: #{_lambda_.1}
  #allocation0 [shape = 'u32[]', space=smem, size = 0x4, offset = 0x4, fixed_abs, tag = 'smem constant byte address 0x4 - core index']
  #allocation1 [shape = 'u32[144,128]{1,0:T(1,128)}', space=vmem, size = 0x12000, scoped, tag = 'internal scratch']
  %s0 = inlined_call_operand.hbm [shape: f32[8,32], index: 0, kind: input, shape index: {}]
  %s1 = inlined_call_operand.hbm [shape: bf16[32,32], index: 1, kind: input, shape index: {}]
  %s2 = inlined_call_operand.vmem [shape: f32[1,32], index: 2, kind: input, shape index: {}]
  %s3 = inlined_call_operand.hbm [shape: bf16[32,32], index: 3, kind: input, shape index: {}]
  %s4 = inlined_call_operand.vmem [shape: f32[1,32], index: 4, kind: input, shape index: {}]
  %s5 = inlined_call_operand.vmem [shape: bf16[32,128], index: 5, kind: input, shape index: {}]
  %s6 = inlined_call_operand.hbm [shape: f32[1,128], index: 6, kind: input, shape index: {}]
  %s7 = inlined_call_operand.vmem [shape: f32[8,128], index: 7, kind: input, shape index: {}]
  %s8 = inlined_call_operand.hbm [shape: bf16[8,128], index: 8, kind: output, shape index: {}]
  %s9 = sld [smem:[#allocation0]]
  $region58: #{_lambda_.1} parent=0
    _
  %s11 = ssub.s32 1, %s9
  %s12 = scalar_select 0, %s11, %s9
  $region1: #{_lambda_.1} parent=0
    #allocation2 [shape = 'u8[4096]{0}', space=vmem, size = 0x1000, scoped, tag = 'input window, operand 0, single buffered']
    #allocation3 [shape = 's32[1]{0}', space=sflag, size = 0x4, scoped, tag = 'scoped memory for _lambda_.1']
    #allocation4 [shape = 's32[1]{0}', space=sflag, size = 0x4, scoped, tag = 'scoped memory for _lambda_.1']
    #allocation5 [shape = 'u8[8192]{0}', space=vmem, size = 0x2000, scoped, tag = 'input window, operand 1, single buffered']
    #allocation6 [shape = 's32[1]{0}', space=sflag, size = 0x4, scoped, tag = 'scoped memory for _lambda_.1']
    #allocation7 [shape = 'u8[8192]{0}', space=vmem, size = 0x2000, scoped, tag = 'input window, operand 3, single buffered']
    #allocation8 [shape = 'u8[512]{0}', space=vmem, size = 0x400, scoped, tag = 'input window, operand 6, single buffered']
    #allocation9 [shape = 's32[1]{0}', space=sflag, size = 0x4, scoped, tag = 'scoped memory for _lambda_.1']
    #allocation10 [shape = 'u8[2048]{0}', space=vmem, size = 0x800, scoped, tag = 'output window, operand 0, single buffered']
    %13 = vsyncpa [#allocation3], 0
    %14 = vsyncpa [#allocation6], 0
    %15 = vsyncpa [#allocation9], 0
    %16 = vsyncpa [#allocation4], 0
    // Predicated region
    $region2: #{_lambda_.1} parent=1 // pred_check
      _
    $region3: #{_lambda_.1} parent=1 // pred_check_branch
      %18 = sbr.rel (0) target = $region5
    $region4: #{_lambda_.1} parent=1 // pred_region
      %s20 = ssub.s32 128, 128
      %21 = vsyncadd [#allocation3], %s20
      %s23 = sshll.u32 [#allocation2], 4
      %s24 = int_to_ptr.vmem [resolvable:$true] %s23
      %26 = dma.hbm_to_vmem [thread:$0]  %s0, 128, %s24, [#allocation3]
    $region5: #{_lambda_.1} parent=1 // pred_fallthru
      _
    // Predicated region
    $region6: #{_lambda_.1} parent=1 // pred_check
      _
    $region7: #{_lambda_.1} parent=1 // pred_check_branch
      %28 = sbr.rel (0) target = $region9
    $region8: #{_lambda_.1} parent=1 // pred_region
      %s30 = ssub.s32 256, 256
      %31 = vsyncadd [#allocation6], %s30
      %s32 = sshll.u32 [#allocation5], 4
      %s33 = int_to_ptr.vmem [resolvable:$true] %s32
      %38 = dma.hbm_to_vmem [thread:$0]  %s1, 256, %s33, [#allocation6], 64, 64, 4
    $region9: #{_lambda_.1} parent=1 // pred_fallthru
      _
    // Predicated region
    $region10: #{_lambda_.1} parent=1 // pred_check
      _
    $region11: #{_lambda_.1} parent=1 // pred_check_branch
      %40 = sbr.rel (0) target = $region13
    $region12: #{_lambda_.1} parent=1 // pred_region
      _
    $region13: #{_lambda_.1} parent=1 // pred_fallthru
      _
    // Predicated region
    $region14: #{_lambda_.1} parent=1 // pred_check
      _
    $region15: #{_lambda_.1} parent=1 // pred_check_branch
      %42 = sbr.rel (0) target = $region17
    $region16: #{_lambda_.1} parent=1 // pred_region
      %s44 = ssub.s32 256, 256
      %45 = vsyncadd [#allocation6], %s44
      %s46 = sshll.u32 [#allocation7], 4
      %s47 = int_to_ptr.vmem [resolvable:$true] %s46
      %52 = dma.hbm_to_vmem [thread:$0]  %s3, 256, %s47, [#allocation6], 64, 64, 4
    $region17: #{_lambda_.1} parent=1 // pred_fallthru
      _
    // Predicated region
    $region18: #{_lambda_.1} parent=1 // pred_check
      _
    $region19: #{_lambda_.1} parent=1 // pred_check_branch
      %54 = sbr.rel (0) target = $region21
    $region20: #{_lambda_.1} parent=1 // pred_region
      _
    $region21: #{_lambda_.1} parent=1 // pred_fallthru
      _
    // Predicated region
    $region22: #{_lambda_.1} parent=1 // pred_check
      _
    $region23: #{_lambda_.1} parent=1 // pred_check_branch
      %56 = sbr.rel (0) target = $region25
    $region24: #{_lambda_.1} parent=1 // pred_region
      _
    $region25: #{_lambda_.1} parent=1 // pred_fallthru
      _
    // Predicated region
    $region26: #{_lambda_.1} parent=1 // pred_check
      _
    $region27: #{_lambda_.1} parent=1 // pred_check_branch
      %58 = sbr.rel (0) target = $region29
    $region28: #{_lambda_.1} parent=1 // pred_region
      %s60 = ssub.s32 16, 16
      %61 = vsyncadd [#allocation9], %s60
      %s63 = sshll.u32 [#allocation8], 4
      %s64 = int_to_ptr.vmem [resolvable:$true] %s63
      %66 = dma.hbm_to_vmem [thread:$0]  %s6, 16, %s64, [#allocation9]
    $region29: #{_lambda_.1} parent=1 // pred_fallthru
      _
    // Predicated region
    $region30: #{_lambda_.1} parent=1 // pred_check
      _
    $region31: #{_lambda_.1} parent=1 // pred_check_branch
      %68 = sbr.rel (0) target = $region33
    $region32: #{_lambda_.1} parent=1 // pred_region
      _
    $region33: #{_lambda_.1} parent=1 // pred_fallthru
      _
    // Predicated region
    $region34: #{_lambda_.1} parent=1 // pred_check
      _
    $region35: #{_lambda_.1} parent=1 // pred_check_branch
      %70 = sbr.rel (0) target = $region37
    $region36: #{_lambda_.1} parent=1 // pred_region
      %71 = dma.done [#allocation3], 128
    $region37: #{_lambda_.1} parent=1 // pred_fallthru
      _
    // Predicated region
    $region38: #{_lambda_.1} parent=1 // pred_check
      _
    $region39: #{_lambda_.1} parent=1 // pred_check_branch
      %73 = sbr.rel (0) target = $region41
    $region40: #{_lambda_.1} parent=1 // pred_region
      %74 = dma.done [#allocation6], 256
    $region41: #{_lambda_.1} parent=1 // pred_fallthru
      _
    // Predicated region
    $region42: #{_lambda_.1} parent=1 // pred_check
      _
    $region43: #{_lambda_.1} parent=1 // pred_check_branch
      %76 = sbr.rel (0) target = $region45
    $region44: #{_lambda_.1} parent=1 // pred_region
      %77 = dma.done [#allocation6], 256
    $region45: #{_lambda_.1} parent=1 // pred_fallthru
      _
    // Predicated region
    $region46: #{_lambda_.1} parent=1 // pred_check
      _
    $region47: #{_lambda_.1} parent=1 // pred_check_branch
      %79 = sbr.rel (0) target = $region49
    $region48: #{_lambda_.1} parent=1 // pred_region
      %80 = dma.done [#allocation9], 16
    $region49: #{_lambda_.1} parent=1 // pred_fallthru
      _
    %v82 = vld [vmem:[#allocation2] sm:$0xff]
    %v83 = vpack.c.bf16 %v82, %v82
    %v84 = vld [vmem:[#allocation5] sm:$0xf]
    %v85 = vld [vmem:[#allocation5 + $0x4] sm:$0xf]
    %v86 = vld [vmem:[#allocation5 + $0x8] sm:$0xf]
    %v87 = vld [vmem:[#allocation5 + $0xc] sm:$0xf]
    %v88 = vld [vmem:[%s2] sm:$0x1]
    %v90 = vlaneseq
    %v91 = vshrl.u32 %v90, 7
    %v92 = vsub.s32 0, %v91
    %v93 = vrot.slane %v88, %v92
    %v99 = vunpack.c.l.b16 %v84
    %v100 = vunpack.c.l.b16 %v85
    %v101 = vunpack.c.l.b16 %v86
    %v102 = vunpack.c.l.b16 %v87
    %v103 = vpack.c.b16 %v100, %v99
    %v104 = vpack.c.b16 %v102, %v101
    %vm107 = vcmask 261120
    %v109 = vsel %vm107, %v83, 0
    %111 = vmatprep.subr.bf16.mxu0 0
    %112 = vmatpush1.bf16.msra.mxu0 %v103
    %113 = vmatprep.subr.bf16.mxu0 0
    %114 = vmatpush1.bf16.msra.mxu0 %v104
    %115 = vmatprep.subr.bf16.mxu0 0
    %116 = vmatpush1.bf16.msra.mxu0 0
    %117 = vmatprep.subr.bf16.mxu0 0
    %118 = vmatpush1.bf16.msra.mxu0 0
    %119 = vmatprep.subr.bf16.mxu0 0
    %120 = vmatpush1.bf16.msra.mxu0 0
    %121 = vmatprep.subr.bf16.mxu0 0
    %122 = vmatpush1.bf16.msra.mxu0 0
    %123 = vmatprep.subr.bf16.mxu0 0
    %124 = vmatpush1.bf16.msra.mxu0 0
    %125 = vmatprep.subr.bf16.mxu0 0
    %126 = vmatpush1.bf16.msra.mxu0 0
    %127 = vmatprep.subr.bf16.mxu0 0
    %128 = vmatpush1.bf16.msra.mxu0 0
    %129 = vmatprep.subr.bf16.mxu0 0
    %130 = vmatpush1.bf16.msra.mxu0 0
    %131 = vmatprep.subr.bf16.mxu0 0
    %132 = vmatpush1.bf16.msra.mxu0 0
    %133 = vmatprep.subr.bf16.mxu0 0
    %134 = vmatpush1.bf16.msra.mxu0 0
    %135 = vmatprep.subr.bf16.mxu0 0
    %136 = vmatpush1.bf16.msra.mxu0 0
    %137 = vmatprep.subr.bf16.mxu0 0
    %138 = vmatpush1.bf16.msra.mxu0 0
    %139 = vmatprep.subr.bf16.mxu0 0
    %140 = vmatpush1.bf16.msra.mxu0 0
    %141 = vmatprep.subr.bf16.mxu0 0
    %142 = vmatpush1.bf16.msra.mxu0 0
    %143 = vmatprep.mubr.bf16.mxu0 0
    %144 = vmatmul.mubr.bf16.gmra.mrb[0].mxu0 %v109
    %v145 = vpop.f32.mrb[0].mxu0
    %v146 = vadd.f32 %v93, %v145
    %v147 = vpop.f32.mrb[0].mxu0
    %v148 = vpop.f32.mrb[0].mxu0
    %v149 = vpop.f32.mrb[0].mxu0
    %150 = vdwg.mxu0
    %v151 = vmul.f32 %v146, 0.1
    %v152 = vmax.f32 %v146, %v151
    %v153 = vpack.c.bf16 %v152, %v152
    %v154 = vld [vmem:[#allocation7] sm:$0xf]
    %v155 = vld [vmem:[#allocation7 + $0x4] sm:$0xf]
    %v156 = vld [vmem:[#allocation7 + $0x8] sm:$0xf]
    %v157 = vld [vmem:[#allocation7 + $0xc] sm:$0xf]
    %v158 = vld [vmem:[%s4] sm:$0x1]
    %v160 = vlaneseq
    %v161 = vshrl.u32 %v160, 7
    %v162 = vsub.s32 0, %v161
    %v163 = vrot.slane %v158, %v162
    %v169 = vunpack.c.l.b16 %v154
    %v170 = vunpack.c.l.b16 %v155
    %v171 = vunpack.c.l.b16 %v156
    %v172 = vunpack.c.l.b16 %v157
    %v173 = vpack.c.b16 %v170, %v169
    %v174 = vpack.c.b16 %v172, %v171
    %v178 = vsel %vm107, %v153, 0
    %180 = vmatprep.subr.bf16.mxu0 0
    %181 = vmatpush1.bf16.msra.mxu0 %v173
    %182 = vmatprep.subr.bf16.mxu0 0
    %183 = vmatpush1.bf16.msra.mxu0 %v174
    %184 = vmatprep.subr.bf16.mxu0 0
    %185 = vmatpush1.bf16.msra.mxu0 0
    %186 = vmatprep.subr.bf16.mxu0 0
    %187 = vmatpush1.bf16.msra.mxu0 0
    %188 = vmatprep.subr.bf16.mxu0 0
    %189 = vmatpush1.bf16.msra.mxu0 0
    %190 = vmatprep.subr.bf16.mxu0 0
    %191 = vmatpush1.bf16.msra.mxu0 0
    %192 = vmatprep.subr.bf16.mxu0 0
    %193 = vmatpush1.bf16.msra.mxu0 0
    %194 = vmatprep.subr.bf16.mxu0 0
    %195 = vmatpush1.bf16.msra.mxu0 0
    %196 = vmatprep.subr.bf16.mxu0 0
    %197 = vmatpush1.bf16.msra.mxu0 0
    %198 = vmatprep.subr.bf16.mxu0 0
    %199 = vmatpush1.bf16.msra.mxu0 0
    %200 = vmatprep.subr.bf16.mxu0 0
    %201 = vmatpush1.bf16.msra.mxu0 0
    %202 = vmatprep.subr.bf16.mxu0 0
    %203 = vmatpush1.bf16.msra.mxu0 0
    %204 = vmatprep.subr.bf16.mxu0 0
    %205 = vmatpush1.bf16.msra.mxu0 0
    %206 = vmatprep.subr.bf16.mxu0 0
    %207 = vmatpush1.bf16.msra.mxu0 0
    %208 = vmatprep.subr.bf16.mxu0 0
    %209 = vmatpush1.bf16.msra.mxu0 0
    %210 = vmatprep.subr.bf16.mxu0 0
    %211 = vmatpush1.bf16.msra.mxu0 0
    %212 = vmatprep.mubr.bf16.mxu0 0
    %213 = vmatmul.mubr.bf16.gmra.mrb[0].mxu0 %v178
    %v214 = vpop.f32.mrb[0].mxu0
    %v215 = vadd.f32 %v163, %v214
    %v216 = vpop.f32.mrb[0].mxu0
    %v217 = vpop.f32.mrb[0].mxu0
    %v218 = vpop.f32.mrb[0].mxu0
    %219 = vdwg.mxu0
    %v220 = vmul.f32 %v215, 0.1
    %v221 = vmax.f32 %v215, %v220
    %v222 = vpack.c.bf16 %v221, %v221
    %v223 = vld [vmem:[%s5] sm:$0xf]
    %v224 = vld [vmem:[%s5 + $0x4] sm:$0xf]
    %v225 = vld [vmem:[%s5 + $0x8] sm:$0xf]
    %v226 = vld [vmem:[%s5 + $0xc] sm:$0xf]
    %v227 = vld [vmem:[#allocation8] sm:$0x1]
    %v229 = vlaneseq
    %v230 = vshrl.u32 %v229, 7
    %v231 = vsub.s32 0, %v230
    %v232 = vrot.slane %v227, %v231
    %v238 = vunpack.c.l.b16 %v223
    %v239 = vunpack.c.l.b16 %v224
    %v240 = vunpack.c.l.b16 %v225
    %v241 = vunpack.c.l.b16 %v226
    %v242 = vpack.c.b16 %v239, %v238
    %v243 = vpack.c.b16 %v241, %v240
    %v247 = vsel %vm107, %v222, 0
    %249 = vmatprep.subr.bf16.mxu0 0
    %250 = vmatpush1.bf16.msra.mxu0 %v242
    %251 = vmatprep.subr.bf16.mxu0 0
    %252 = vmatpush1.bf16.msra.mxu0 %v243
    %253 = vmatprep.subr.bf16.mxu0 0
    %254 = vmatpush1.bf16.msra.mxu0 0
    %255 = vmatprep.subr.bf16.mxu0 0
    %256 = vmatpush1.bf16.msra.mxu0 0
    %257 = vmatprep.subr.bf16.mxu0 0
    %258 = vmatpush1.bf16.msra.mxu0 0
    %259 = vmatprep.subr.bf16.mxu0 0
    %260 = vmatpush1.bf16.msra.mxu0 0
    %261 = vmatprep.subr.bf16.mxu0 0
    %262 = vmatpush1.bf16.msra.mxu0 0
    %263 = vmatprep.subr.bf16.mxu0 0
    %264 = vmatpush1.bf16.msra.mxu0 0
    %265 = vmatprep.subr.bf16.mxu0 0
    %266 = vmatpush1.bf16.msra.mxu0 0
    %267 = vmatprep.subr.bf16.mxu0 0
    %268 = vmatpush1.bf16.msra.mxu0 0
    %269 = vmatprep.subr.bf16.mxu0 0
    %270 = vmatpush1.bf16.msra.mxu0 0
    %271 = vmatprep.subr.bf16.mxu0 0
    %272 = vmatpush1.bf16.msra.mxu0 0
    %273 = vmatprep.subr.bf16.mxu0 0
    %274 = vmatpush1.bf16.msra.mxu0 0
    %275 = vmatprep.subr.bf16.mxu0 0
    %276 = vmatpush1.bf16.msra.mxu0 0
    %277 = vmatprep.subr.bf16.mxu0 0
    %278 = vmatpush1.bf16.msra.mxu0 0
    %279 = vmatprep.subr.bf16.mxu0 0
    %280 = vmatpush1.bf16.msra.mxu0 0
    %281 = vmatprep.mubr.bf16.mxu0 0
    %282 = vmatmul.mubr.bf16.gmra.mrb[0].mxu0 %v247
    %v283 = vpop.f32.mrb[0].mxu0
    %v284 = vadd.f32 %v232, %v283
    %v285 = vpop.f32.mrb[0].mxu0
    %v286 = vpop.f32.mrb[0].mxu0
    %v287 = vpop.f32.mrb[0].mxu0
    %288 = vdwg.mxu0
    %v289 = vld [vmem:[%s7] sm:$0xff]
    %v290 = vlaneseq
    %v291 = vshrl.u32 %v290, 7
    %v292 = vsub.s32 0, %v291
    %v293 = vrot.slane %v289, %v292
    %v294 = vmul.f32 %v284, %v293
    %v295 = vlaneseq
    %v296 = vshrl.u32 %v295, 7
    %v297 = vsub.s32 1, %v296
    %v298 = vrot.slane %v289, %v297
    %v299 = vadd.f32 %v294, %v298
    %vm300 = vcmp.gt.f32.partialorder %v289, 0.5
    %v301 = vtanh.pop %v299
    %v302 = vlaneseq
    %v303 = vshrl.u32 %v302, 7
    %v304 = vsub.s32 5, %v303
    %v305 = vrot.slane %v289, %v304
    %v306 = vmax.f32 %v299, %v305
    %v307 = vsel %vm300, 1, 0
    %v308 = vlaneseq
    %v309 = vshrl.u32 %v308, 7
    %v310 = vsub.s32 4, %v309
    %v311 = vrot.slane %v307, %v310
    %vm312 = vcmp.eq.s32.totalorder %v311, 1
    %v313 = vsel %vm312, %v301, %v306
    %v314 = vlaneseq
    %v315 = vshrl.u32 %v314, 7
    %v316 = vsub.s32 2, %v315
    %v317 = vrot.slane %v289, %v316
    %v318 = vmul.f32 %v313, %v317
    %v319 = vlaneseq
    %v320 = vshrl.u32 %v319, 7
    %v321 = vsub.s32 3, %v320
    %v322 = vrot.slane %v289, %v321
    %v323 = vadd.f32 %v318, %v322
    %v324 = vpack.c.bf16 %v323, %v323
    %325 = vst [vmem:[#allocation10] sm:$0xf] %v324
    // Predicated region
    $region50: #{_lambda_.1} parent=1 // pred_check
      _
    $region51: #{_lambda_.1} parent=1 // pred_check_branch
      %327 = sbr.rel (0) target = $region53
    $region52: #{_lambda_.1} parent=1 // pred_region
      %s329 = ssub.s32 64, 64
      %330 = vsyncadd [#allocation4], %s329
      %s332 = sshll.u32 [#allocation10], 4
      %s333 = int_to_ptr.vmem [resolvable:$true] %s332
      %335 = dma.vmem_to_hbm [thread:$0]  %s333, 64, %s8, [#allocation4]
    $region53: #{_lambda_.1} parent=1 // pred_fallthru
      _
    // Predicated region
    $region54: #{_lambda_.1} parent=1 // pred_check
      _
    $region55: #{_lambda_.1} parent=1 // pred_check_branch
      %337 = sbr.rel (0) target = $region57
    $region56: #{_lambda_.1} parent=1 // pred_region
      %338 = dma.done [#allocation4], 64
    $region57: #{_lambda_.1} parent=1 // pred_fallthru
      _
    %339 = vsyncpa [#allocation3], 1
    %340 = vsyncpa [#allocation6], 1
    %341 = vsyncpa [#allocation9], 1
    %342 = vsyncpa [#allocation4], 1

</llo_original>
